<compile_context>
chip_gen: v7x
topology: tpu7x:2x2x1
jax: 0.10.0
libtpu: 0.0.40
codegen_flags: <defaults>
</compile_context>

<pallas_src>
import jax
import jax.numpy as jnp
from jax.experimental import pallas as pl
from jax.experimental.pallas import tpu as pltpu

_VMEM_WORKING_BUDGET = 40 << 20      # target working set (safe under v7x 64 MiB)
_VMEM_LIMIT_CAP = 56 << 20           # never request more scoped VMEM than this
_RESIDENT_TABLE_BYTES = 8 << 20      # tv = V fast path if table <= this (x2 bufs)
_STREAM_SLAB_BYTES = 12 << 20        # cap on 2 * tv * E * itemsize when streaming


def _grams_kernel(ids_ref, w_ref, out_ref):
    # ids_ref: (TS, B) int32 | w_ref: (TV, E) | out_ref: (TS, E) f32, VMEM
    # resident across the vocab (reduction) grid axis -> it is the accumulator.
    k = pl.program_id(1)

    @pl.when(k == 0)
    def _():
        out_ref[...] = jnp.zeros_like(out_ref)

    ids = ids_ref[...]                       # (TS, B)
    TS, B = ids.shape
    TV = w_ref.shape[0]

    # Shift ids into this vocab chunk's local [0, TV) range: a (TS, B) subtract
    # instead of adding k*TV to the whole (TS, TV) iota every grid step.
    local = ids - k * TV                     # ids outside [0, TV) never match
    cls = jax.lax.broadcasted_iota(jnp.int32, (TS, TV), 1)

    # Union (OR) over the batch dim == the PyTorch n_hot scatter loop.
    hit = local[:, 0:1] == cls
    for b in range(1, B):                    # static unroll, B is small
        hit = jnp.logical_or(hit, local[:, b:b + 1] == cls)
    multihot = hit.astype(w_ref.dtype)       # 0/1 exact in bf16 too

    # (TS, TV) @ (TV, E) partial product on the MXU; f32 accumulation directly
    # into the resident output block (lane-dense, E is a full block).
    out_ref[...] += jnp.dot(multihot, w_ref[...],
                            preferred_element_type=jnp.float32)


def _working_set_bytes(ts, tv, E, w_itemsize):
    weight_bufs = 2 * tv * E * w_itemsize        # double-buffered table slab
    out_bufs = 2 * ts * E * 4                    # resident f32 output tile
    multihot_tmp = ts * tv * (w_itemsize + 1)    # multihot (weight dtype) + bool masks
    ids_bufs = 2 * ts * 128 * 4                  # lane-padded (ts, B) id tile
    return weight_bufs + out_bufs + multihot_tmp + ids_bufs


def _choose_tv(V, E, w_itemsize):
    if V * E * w_itemsize <= _RESIDENT_TABLE_BYTES:
        return V                                 # whole table stays VMEM-resident
    for c in (2048, 1024, 512, 256, 128):
        if V % c == 0 and 2 * c * E * w_itemsize <= _STREAM_SLAB_BYTES:
            return c
    return V                                     # odd / awkward vocab: take whole


def _choose_ts(S, V, E, tv, w_itemsize):
    cands = [c for c in (1024, 512, 256, 128)
             if S % c == 0
             and _working_set_bytes(c, tv, E, w_itemsize) <= _VMEM_WORKING_BUDGET]
    if not cands:
        return S                                 # tiny / odd sequence: take whole
    if tv == V:
        # Table resident: it is streamed once regardless of ts, so prefer >= 2
        # sequence tiles (lets the "parallel" axis shard over v7x's 2 TCs).
        for c in cands:
            if S // c >= 2:
                return c
    return cands[0]                              # streaming: biggest ts wins


def grams_embedding(ids: jax.Array, weight: jax.Array, *,
                    ts: int | None = None, tv: int | None = None,
                    weight_stream_dtype=None):
    """ids: (B, S) int, weight: (V, E) -> (S, E) float32.

    weight_stream_dtype: optional dtype (e.g. jnp.bfloat16) the table is cast
      to before streaming; halves HBM traffic, output differs from the f32
      reference only by rounding of the selected rows (explicit opt-in).
    Out-of-range ids silently contribute nothing (PyTorch's scatter_ would
    raise instead).
    """
    B, S = ids.shape
    V, E = weight.shape
    if weight_stream_dtype is not None:
        weight = weight.astype(weight_stream_dtype)
    w_itemsize = jnp.dtype(weight.dtype).itemsize

    if tv is None:
        tv = _choose_tv(V, E, w_itemsize)
    if ts is None:
        ts = _choose_ts(S, V, E, tv, w_itemsize)
    assert S % ts == 0 and V % tv == 0
    assert ts == S or ts % 8 == 0, "sequence tile must be sublane-aligned or full"
    assert tv == V or tv % 8 == 0, "vocab tile must be sublane-aligned or full"

    vmem_limit = int(min(
        _VMEM_LIMIT_CAP,
        max(_working_set_bytes(ts, tv, E, w_itemsize) + (4 << 20), 32 << 20)))

    # (S, B): per-batch column is sublane-major, matching the (ts, tv) compare.
    ids_t = jnp.transpose(ids.astype(jnp.int32))

    return pl.pallas_call(
        _grams_kernel,
        out_shape=jax.ShapeDtypeStruct((S, E), jnp.float32),
        grid_spec=pltpu.PrefetchScalarGridSpec(
            num_scalar_prefetch=0,
            grid=(S // ts, V // tv),                          # reduction axis last
            in_specs=[
                pl.BlockSpec((ts, B), lambda i, k: (i, 0)),   # token-id tile
                pl.BlockSpec((tv, E), lambda i, k: (k, 0)),   # vocab slab of table
            ],
            out_specs=pl.BlockSpec((ts, E), lambda i, k: (i, 0)),  # resident acc
        ),
        compiler_params=pltpu.CompilerParams(
            dimension_semantics=("parallel", "arbitrary"),
            vmem_limit_bytes=vmem_limit),
    )(ids_t, weight)


if __name__ == "__main__":
    key = jax.random.PRNGKey(0)

    def ref_forward(ids, weight_f32):
        V = weight_f32.shape[0]
        onehot = jax.nn.one_hot(ids, V, dtype=jnp.float32)          # (B, S, V)
        multihot = (onehot.sum(axis=0) > 0).astype(jnp.float32)     # union over B
        return multihot @ weight_f32

    # 1) Small shapes consistent with the module (table-resident fast path).
    B, S, V, E = 2, 8, 128, 128
    k_ids, k_w, key = jax.random.split(key, 3)
    ids = jax.random.randint(k_ids, (B, S), 0, V, dtype=jnp.int32)
    weight = jax.random.normal(k_w, (V, E), dtype=jnp.float32)   # nn.Embedding init
    out = jax.block_until_ready(grams_embedding(ids, weight))
    assert out.shape == (S, E) and out.dtype == jnp.float32
    assert jnp.allclose(out, ref_forward(ids, weight), atol=1e-5, rtol=1e-5)

    # 2) Exercises the streamed V-reduction (vocab grid = 4) and a 256-row tile.
    B2, S2, V2, E2 = 3, 256, 512, 256
    k_ids2, k_w2, key = jax.random.split(key, 3)
    ids2 = jax.random.randint(k_ids2, (B2, S2), 0, V2, dtype=jnp.int32)
    weight2 = jax.random.normal(k_w2, (V2, E2), dtype=jnp.float32)
    out2 = jax.block_until_ready(grams_embedding(ids2, weight2, tv=128))
    assert out2.shape == (S2, E2)
    assert jnp.allclose(out2, ref_forward(ids2, weight2), atol=1e-4, rtol=1e-4)

    # 3) Opt-in bf16 weight streaming: exact f32 sums of bf16-rounded rows.
    B3, S3, V3, E3 = 2, 128, 256, 128
    k_ids3, k_w3, key = jax.random.split(key, 3)
    ids3 = jax.random.randint(k_ids3, (B3, S3), 0, V3, dtype=jnp.int32)
    weight3 = jax.random.normal(k_w3, (V3, E3), dtype=jnp.float32)
    out3 = jax.block_until_ready(
        grams_embedding(ids3, weight3, weight_stream_dtype=jnp.bfloat16))
    ref3 = ref_forward(ids3, weight3.astype(jnp.bfloat16).astype(jnp.float32))
    assert out3.shape == (S3, E3)
    assert jnp.allclose(out3, ref3, atol=1e-4, rtol=1e-4)

    print("KERNEL_OK")
</pallas_src>

<mosaic_0001>
module attributes {stable_mosaic.version = 11 : i64} {
  func.func @_grams_kernel(%arg0: i32, %arg1: i32, %arg2: memref<8x2xi32, #tpu.memory_space<vmem>>, %arg3: memref<128x128xf32, #tpu.memory_space<vmem>>, %arg4: memref<8x128xf32, #tpu.memory_space<vmem>>) attributes {dimension_semantics = [#tpu.dimension_semantics<parallel>, #tpu.dimension_semantics<arbitrary>], iteration_bounds = array<i64: 1, 1>, scalar_prefetch = 0 : i64, scratch_operands = 0 : i64, tpu.core_type = #tpu.core_type<tc>, window_params = [{transform_indices = @transform_0, window_bounds = array<i64: 8, 2>}, {transform_indices = @transform_1, window_bounds = array<i64: 128, 128>}, {transform_indices = @transform_2, window_bounds = array<i64: 8, 128>}]} {
    %c0_i32 = arith.constant 0 : i32
    %0 = arith.cmpi eq, %arg1, %c0_i32 : i32
    %1 = arith.extui %0 : i1 to i32
    %c0_i32_0 = arith.constant 0 : i32
    %2 = arith.cmpi ne, %1, %c0_i32_0 : i32
    scf.if %2 {
      %cst_8 = arith.constant 0.000000e+00 : f32
      %22 = vector.broadcast %cst_8 : f32 to vector<8x128xf32>
      %c0_9 = arith.constant 0 : index
      %c0_10 = arith.constant 0 : index
      %23 = vector.load %arg4[%c0_9, %c0_10] : memref<8x128xf32, #tpu.memory_space<vmem>>, vector<8x128xf32>
      tpu.vector_store %arg4[%c0_9, %c0_10], %22 {strides = array<i32>} : memref<8x128xf32, #tpu.memory_space<vmem>>, vector<8x128xf32>,
    } else {
    }
    %c0 = arith.constant 0 : index
    %c0_1 = arith.constant 0 : index
    %3 = vector.load %arg2[%c0, %c0_1] : memref<8x2xi32, #tpu.memory_space<vmem>>, vector<8x2xi32>
    %c128_i32 = arith.constant 128 : i32
    %4 = arith.muli %arg1, %c128_i32 : i32
    %5 = vector.broadcast %4 : i32 to vector<8x2xi32>
    %6 = arith.subi %3, %5 : vector<8x2xi32>
    %7 = tpu.iota {dimensions = array<i32: 1>} : vector<8x128xi32>
    %8 = vector.extract_strided_slice %6 {offsets = [0, 0], sizes = [8, 1], strides = [1, 1]} : vector<8x2xi32> to vector<8x1xi32>
    %9 = vector.broadcast %8 : vector<8x1xi32> to vector<8x128xi32>
    %10 = arith.cmpi eq, %9, %7 : vector<8x128xi32>
    %11 = vector.extract_strided_slice %6 {offsets = [0, 1], sizes = [8, 1], strides = [1, 1]} : vector<8x2xi32> to vector<8x1xi32>
    %12 = vector.broadcast %11 : vector<8x1xi32> to vector<8x128xi32>
    %13 = arith.cmpi eq, %12, %7 : vector<8x128xi32>
    %14 = arith.ori %10, %13 : vector<8x128xi1>
    %15 = arith.extui %14 : vector<8x128xi1> to vector<8x128xi32>
    %16 = arith.sitofp %15 : vector<8x128xi32> to vector<8x128xf32>
    %c0_2 = arith.constant 0 : index
    %c0_3 = arith.constant 0 : index
    %17 = vector.load %arg4[%c0_2, %c0_3] : memref<8x128xf32, #tpu.memory_space<vmem>>, vector<8x128xf32>
    %c0_4 = arith.constant 0 : index
    %c0_5 = arith.constant 0 : index
    %18 = vector.load %arg3[%c0_4, %c0_5] : memref<128x128xf32, #tpu.memory_space<vmem>>, vector<128x128xf32>
    %cst = arith.constant dense<0.000000e+00> : vector<8x128xf32>
    %19 = tpu.matmul %16, %18, %cst {dimension_numbers = #tpu.dot_dimension_numbers<[1], [0], [0], [1], [0, 0, 1, 1], [], []>} : vector<8x128xf32>, vector<128x128xf32>, vector<8x128xf32> -> vector<8x128xf32>
    %20 = arith.addf %17, %19 : vector<8x128xf32>
    %c0_6 = arith.constant 0 : index
    %c0_7 = arith.constant 0 : index
    %21 = vector.load %arg4[%c0_6, %c0_7] : memref<8x128xf32, #tpu.memory_space<vmem>>, vector<8x128xf32>
    tpu.vector_store %arg4[%c0_6, %c0_7], %20 {strides = array<i32>} : memref<8x128xf32, #tpu.memory_space<vmem>>, vector<8x128xf32>,
    return
  }
  func.func @transform_0(%arg0: i32, %arg1: i32) -> (i32, i32) {
    %c0_i32 = arith.constant 0 : i32
    %c0_i32_0 = arith.constant 0 : i32
    return %arg0, %c0_i32 : i32, i32
  }
  func.func @transform_1(%arg0: i32, %arg1: i32) -> (i32, i32) {
    %c0_i32 = arith.constant 0 : i32
    %c0_i32_0 = arith.constant 0 : i32
    return %arg1, %c0_i32 : i32, i32
  }
  func.func @transform_2(%arg0: i32, %arg1: i32) -> (i32, i32) {
    %c0_i32 = arith.constant 0 : i32
    %c0_i32_0 = arith.constant 0 : i32
    return %arg0, %c0_i32 : i32, i32
  }
}

</mosaic_0001>

<llo_original>
// kernel: tpu_custom_call.1
$region0: #{tpu_custom_call.1}
  #allocation0 [shape = 'u32[]', space=smem, size = 0x4, offset = 0x4, fixed_abs, tag = 'smem constant byte address 0x4 - core index']
  #allocation1 [shape = 'u32[144,128]{1,0:T(1,128)}', space=vmem, size = 0x12000, scoped, tag = 'internal scratch']
  %s0 = inlined_call_operand.vmem [shape: s32[8,2], index: 0, kind: input, shape index: {}]
  %s1 = inlined_call_operand.hbm [shape: f32[128,128], index: 1, kind: input, shape index: {}]
  %s2 = inlined_call_operand.hbm [shape: f32[8,128], index: 2, kind: output, shape index: {}]
  %s3 = sld [smem:[#allocation0]]
  $region26: #{tpu_custom_call.1} parent=0
    _
  %s5 = ssub.s32 1, %s3
  %s6 = scalar_select 0, %s5, %s3
  $region1: #{tpu_custom_call.1} parent=0
    #allocation2 [shape = 'u8[65536]{0}', space=vmem, size = 0x10000, scoped, tag = 'input window, operand 1, single buffered']
    #allocation3 [shape = 's32[1]{0}', space=sflag, size = 0x4, scoped, tag = 'scoped memory for tpu_custom_call.1']
    #allocation4 [shape = 's32[1]{0}', space=sflag, size = 0x4, scoped, tag = 'scoped memory for tpu_custom_call.1']
    #allocation5 [shape = 'u8[4096]{0}', space=vmem, size = 0x1000, scoped, tag = 'output window, operand 0, single buffered']
    %7 = vsyncpa [#allocation3], 0
    %8 = vsyncpa [#allocation4], 0
    // Predicated region
    $region2: #{tpu_custom_call.1} parent=1 // pred_check
      _
    $region3: #{tpu_custom_call.1} parent=1 // pred_check_branch
      %10 = sbr.rel (0) target = $region5
    $region4: #{tpu_custom_call.1} parent=1 // pred_region
      _
    $region5: #{tpu_custom_call.1} parent=1 // pred_fallthru
      _
    // Predicated region
    $region6: #{tpu_custom_call.1} parent=1 // pred_check
      _
    $region7: #{tpu_custom_call.1} parent=1 // pred_check_branch
      %12 = sbr.rel (0) target = $region9
    $region8: #{tpu_custom_call.1} parent=1 // pred_region
      %s14 = ssub.s32 2048, 2048
      %15 = vsyncadd [#allocation3], %s14
      %s16 = sshll.u32 [#allocation2], 4
      %s17 = int_to_ptr.vmem [resolvable:$true] %s16
      %22 = dma.hbm_to_vmem [thread:$0]  %s1, 2048, %s17, [#allocation3], 128, 128, 8
    $region9: #{tpu_custom_call.1} parent=1 // pred_fallthru
      _
    // Predicated region
    $region10: #{tpu_custom_call.1} parent=1 // pred_check
      _
    $region11: #{tpu_custom_call.1} parent=1 // pred_check_branch
      %24 = sbr.rel (0) target = $region13
    $region12: #{tpu_custom_call.1} parent=1 // pred_region
      %25 = dma.done [#allocation3], 2048
    $region13: #{tpu_custom_call.1} parent=1 // pred_fallthru
      _
    %p26 = scmp.eq.s32.totalorder 0, 0
    // Predicated region
    $region14: #{tpu_custom_call.1} parent=1 // pred_check
      %p27 = pneg %p26
    $region15: #{tpu_custom_call.1} parent=1 // pred_check_branch
      %29 = sbr.rel (%p27) target = $region17
    $region16: #{tpu_custom_call.1} parent=1 // pred_region
      %30 = vst [vmem:[#allocation5] sm:$0xff] 0.0
    $region17: #{tpu_custom_call.1} parent=1 // pred_fallthru
      _
    %v31 = vld [vmem:[%s0] sm:$0xff]
    %s32 = smul.u32 0, 128
    %v33 = vstv %s32
    %v34 = vsub.s32 %v31, %v33
    %v35 = vlaneseq
    %v36 = vand.u32 %v35, 127
    %37 = vset.pattern.permute.xlu0 0
    %38 = vperm.xlu0 %37, %v34
    %v39 = vpop.permute.xlu0 %38
    %vm40 = vcmp.eq.s32.totalorder %v39, %v36
    %41 = vset.pattern.permute.xlu0 1
    %42 = vperm.xlu0 %41, %v34
    %v43 = vpop.permute.xlu0 %42
    %vm44 = vcmp.eq.s32.totalorder %v43, %v36
    %vm45 = vmor %vm40, %vm44
    %v46 = vsel %vm45, 1, 0
    %v47 = vcvt.s32.f32 %v46
    %v48 = vld [vmem:[#allocation5] sm:$0xff]
    %v49 = vld [vmem:[#allocation2] sm:$0xff]
    %v50 = vld [vmem:[#allocation2 + $0x8] sm:$0xff]
    %v51 = vld [vmem:[#allocation2 + $0x10] sm:$0xff]
    %v52 = vld [vmem:[#allocation2 + $0x18] sm:$0xff]
    %v53 = vld [vmem:[#allocation2 + $0x20] sm:$0xff]
    %v54 = vld [vmem:[#allocation2 + $0x28] sm:$0xff]
    %v55 = vld [vmem:[#allocation2 + $0x30] sm:$0xff]
    %v56 = vld [vmem:[#allocation2 + $0x38] sm:$0xff]
    %v57 = vld [vmem:[#allocation2 + $0x40] sm:$0xff]
    %v58 = vld [vmem:[#allocation2 + $0x48] sm:$0xff]
    %v59 = vld [vmem:[#allocation2 + $0x50] sm:$0xff]
    %v60 = vld [vmem:[#allocation2 + $0x58] sm:$0xff]
    %v61 = vld [vmem:[#allocation2 + $0x60] sm:$0xff]
    %v62 = vld [vmem:[#allocation2 + $0x68] sm:$0xff]
    %v63 = vld [vmem:[#allocation2 + $0x70] sm:$0xff]
    %v64 = vld [vmem:[#allocation2 + $0x78] sm:$0xff]
    %65 = vmatprep.subr.mxu0 0.0
    %66 = vmatpush1.msra.mxu0 %v49
    %67 = vmatprep.subr.mxu0 0.0
    %68 = vmatpush1.msra.mxu0 %v50
    %69 = vmatprep.subr.mxu0 0.0
    %70 = vmatpush1.msra.mxu0 %v51
    %71 = vmatprep.subr.mxu0 0.0
    %72 = vmatpush1.msra.mxu0 %v52
    %73 = vmatprep.subr.mxu0 0.0
    %74 = vmatpush1.msra.mxu0 %v53
    %75 = vmatprep.subr.mxu0 0.0
    %76 = vmatpush1.msra.mxu0 %v54
    %77 = vmatprep.subr.mxu0 0.0
    %78 = vmatpush1.msra.mxu0 %v55
    %79 = vmatprep.subr.mxu0 0.0
    %80 = vmatpush1.msra.mxu0 %v56
    %81 = vmatprep.subr.mxu0 0.0
    %82 = vmatpush1.msra.mxu0 %v57
    %83 = vmatprep.subr.mxu0 0.0
    %84 = vmatpush1.msra.mxu0 %v58
    %85 = vmatprep.subr.mxu0 0.0
    %86 = vmatpush1.msra.mxu0 %v59
    %87 = vmatprep.subr.mxu0 0.0
    %88 = vmatpush1.msra.mxu0 %v60
    %89 = vmatprep.subr.mxu0 0.0
    %90 = vmatpush1.msra.mxu0 %v61
    %91 = vmatprep.subr.mxu0 0.0
    %92 = vmatpush1.msra.mxu0 %v62
    %93 = vmatprep.subr.mxu0 0.0
    %94 = vmatpush1.msra.mxu0 %v63
    %95 = vmatprep.subr.mxu0 0.0
    %96 = vmatpush1.msra.mxu0 %v64
    %97 = vmatprep.subr.mxu0 0.0
    %98 = vmatpush1.msra.mxu0 0.0
    %99 = vmatprep.subr.mxu0 0.0
    %100 = vmatpush1.msra.mxu0 0.0
    %101 = vmatprep.subr.mxu0 0.0
    %102 = vmatpush1.msra.mxu0 0.0
    %103 = vmatprep.subr.mxu0 0.0
    %104 = vmatpush1.msra.mxu0 0.0
    %105 = vmatprep.subr.mxu0 0.0
    %106 = vmatpush1.msra.mxu0 0.0
    %107 = vmatprep.subr.mxu0 0.0
    %108 = vmatpush1.msra.mxu0 0.0
    %109 = vmatprep.subr.mxu0 0.0
    %110 = vmatpush1.msra.mxu0 0.0
    %111 = vmatprep.subr.mxu0 0.0
    %112 = vmatpush1.msra.mxu0 0.0
    %113 = vmatprep.subr.mxu0 0.0
    %114 = vmatpush1.msra.mxu0 0.0
    %115 = vmatprep.subr.mxu0 0.0
    %116 = vmatpush1.msra.mxu0 0.0
    %117 = vmatprep.subr.mxu0 0.0
    %118 = vmatpush1.msra.mxu0 0.0
    %119 = vmatprep.subr.mxu0 0.0
    %120 = vmatpush1.msra.mxu0 0.0
    %121 = vmatprep.subr.mxu0 0.0
    %122 = vmatpush1.msra.mxu0 0.0
    %123 = vmatprep.subr.mxu0 0.0
    %124 = vmatpush1.msra.mxu0 0.0
    %125 = vmatprep.subr.mxu0 0.0
    %126 = vmatpush1.msra.mxu0 0.0
    %127 = vmatprep.subr.mxu0 0.0
    %128 = vmatpush1.msra.mxu0 0.0
    %129 = vmatprep.mubr.f32.mxu0 0.0
    %130 = vmatmul.mubr.f32.gmra.mrb[0].mxu0 %v47
    %v131 = vpop.f32.mrb[0].mxu0
    %v132 = vadd.f32 0.0, %v131
    %v133 = vpop.f32.mrb[0].mxu0
    %134 = vdwg.mxu0
    %v135 = vadd.f32 %v48, %v132
    %136 = vst [vmem:[#allocation5] sm:$0xff] %v135
    // Predicated region
    $region18: #{tpu_custom_call.1} parent=1 // pred_check
      _
    $region19: #{tpu_custom_call.1} parent=1 // pred_check_branch
      %138 = sbr.rel (0) target = $region21
    $region20: #{tpu_custom_call.1} parent=1 // pred_region
      %s140 = ssub.s32 128, 128
      %141 = vsyncadd [#allocation4], %s140
      %s143 = sshll.u32 [#allocation5], 4
      %s144 = int_to_ptr.vmem [resolvable:$true] %s143
      %146 = dma.vmem_to_hbm [thread:$0]  %s144, 128, %s2, [#allocation4]
    $region21: #{tpu_custom_call.1} parent=1 // pred_fallthru
      _
    // Predicated region
    $region22: #{tpu_custom_call.1} parent=1 // pred_check
      _
    $region23: #{tpu_custom_call.1} parent=1 // pred_check_branch
      %148 = sbr.rel (0) target = $region25
    $region24: #{tpu_custom_call.1} parent=1 // pred_region
      %149 = dma.done [#allocation4], 128
    $region25: #{tpu_custom_call.1} parent=1 // pred_fallthru
      _
    %150 = vsyncpa [#allocation3], 1
    %151 = vsyncpa [#allocation4], 1

</llo_original>
